<compile_context>
chip_gen: v5e
topology: v5e:2x2
jax: 0.10.0
libtpu: 0.0.40
codegen_flags: <defaults>
</compile_context>

<pallas_src>
import math

import jax
import jax.numpy as jnp
from jax import lax
from jax.experimental import pallas as pl
from jax.experimental.pallas import tpu as pltpu

N_QUESTIONS = 3
N_ITEMS = 100
HIDDEN = 256
INPUT_SIZE = 2 * N_ITEMS          # 200 (logical)
INPUT_PAD = 256                   # K padded to a multiple of 128 (clean MXU passes)
ITEMS_PAD = 128                   # each head padded to the 128-lane vreg width
HEADS_PAD = 2 * ITEMS_PAD         # fused fc2|fc3 output width (256)


# ---------------------------------------------------------------------------
# Fused kernel: pad input -> fc1 -> tanh -> ONE fused head matmul -> both heads.
# ---------------------------------------------------------------------------
def _fused_kernel(a_ref, w1_ref, b1_ref, w23_ref, b23_ref, q_ref, x_ref, a_pad):
    # In-kernel zero-pad of the raw (1, 200) f32 answers into a lane-aligned
    # (1, 256) row (no extra XLA dispatch in the wrapper).  The pad lanes must
    # be zeroed (scratch may hold garbage; 0 * anything finite is safe because
    # the corresponding W1 rows are zero, but garbage could be inf/nan).
    a_pad[...] = jnp.zeros_like(a_pad)
    a_pad[:, :INPUT_SIZE] = a_ref[...]
    a_row = a_pad[...].astype(jnp.bfloat16)

    # h = tanh(fc1(answers))  -- bf16 MXU matmul, f32 accumulation, f32 tanh.
    h = jnp.tanh(
        jnp.dot(a_row, w1_ref[...], preferred_element_type=jnp.float32)
        + b1_ref[...]
    )
    h_bf = h.astype(jnp.bfloat16)

    # Both heads in ONE 256-lane dot: lanes [0:128] = fc2 logits (interview),
    # lanes [128:256] = fc3 pre-activation (recommend).
    heads = (
        jnp.dot(h_bf, w23_ref[...], preferred_element_type=jnp.float32)
        + b23_ref[...]
    )
    logits = heads[:, :ITEMS_PAD]          # tile-aligned slice (free)
    rec = heads[:, ITEMS_PAD:]

    # Interview head: sigmoid is monotonic -> argmax over raw logits is
    # identical to argmax over sigmoid(logits).  Mask padded lanes with -inf.
    lane = lax.broadcasted_iota(jnp.int32, logits.shape, 1)
    masked = jnp.where(lane < N_ITEMS, logits, -jnp.inf)
    m = jnp.max(masked)
    idx = jnp.min(jnp.where(masked == m, lane, ITEMS_PAD))   # first occurrence
    q_ref[...] = (lane == idx).astype(jnp.int32)

    # Recommend head: tanh(fc3(h)).
    x_ref[...] = jnp.tanh(rec)


def _full_spec(shape):
    return pl.BlockSpec(shape, lambda: (0,) * len(shape))


_COST = pl.CostEstimate(
    flops=2 * (INPUT_PAD * HIDDEN + HIDDEN * HEADS_PAD),
    transcendentals=HIDDEN + ITEMS_PAD,
    bytes_accessed=(
        2 * (INPUT_PAD * HIDDEN + HIDDEN * HEADS_PAD)   # bf16 weights
        + 4 * (HIDDEN + HEADS_PAD)                      # f32 biases
        + 4 * INPUT_SIZE                                # f32 input row
        + 4 * ITEMS_PAD + 4 * ITEMS_PAD                 # outputs
    ),
)


# ---------------------------------------------------------------------------
# Wrappers
# ---------------------------------------------------------------------------
@jax.jit
def _forward_both(answers, packed_params):
    """One launch; returns (one_hot_question[int32, 100], recommendation[f32, 100])."""
    w1, b1, w23, b23 = packed_params
    a = answers.astype(jnp.float32).reshape(1, INPUT_SIZE)
    q_pad, x_pad = pl.pallas_call(
        _fused_kernel,
        out_shape=(
            jax.ShapeDtypeStruct((1, ITEMS_PAD), jnp.int32),
            jax.ShapeDtypeStruct((1, ITEMS_PAD), jnp.float32),
        ),
        in_specs=[
            _full_spec((1, INPUT_SIZE)),
            _full_spec((INPUT_PAD, HIDDEN)),
            _full_spec((1, HIDDEN)),
            _full_spec((HIDDEN, HEADS_PAD)),
            _full_spec((1, HEADS_PAD)),
        ],
        out_specs=(
            _full_spec((1, ITEMS_PAD)),
            _full_spec((1, ITEMS_PAD)),
        ),
        scratch_shapes=[pltpu.VMEM((1, INPUT_PAD), jnp.float32)],
        cost_estimate=_COST,
    )(a, w1, b1, w23, b23)
    return q_pad[0, :N_ITEMS], x_pad[0, :N_ITEMS]


def interviewing_nn_forward_both(answers, packed_params):
    """Preferred entry point: one launch, both heads."""
    return _forward_both(answers, packed_params)


def interviewing_nn_forward(answers, packed_params, interviewing=True):
    """Mirrors InterviewingNeuralNetwork.forward (single fused launch)."""
    q, x = _forward_both(answers, packed_params)
    return q if interviewing else x


# ---------------------------------------------------------------------------
# Params: PyTorch-Linear-style init, then one-time pack (pad + fuse + bf16).
# ---------------------------------------------------------------------------
def init_params(key):
    def linear(k, fan_in, fan_out):
        kw, kb = jax.random.split(k)
        bound = 1.0 / math.sqrt(fan_in)
        w = jax.random.uniform(kw, (fan_in, fan_out), jnp.float32, -bound, bound)
        b = jax.random.uniform(kb, (1, fan_out), jnp.float32, -bound, bound)
        return w, b

    k1, k2, k3 = jax.random.split(key, 3)
    w1, b1 = linear(k1, INPUT_SIZE, HIDDEN)
    w2, b2 = linear(k2, HIDDEN, N_ITEMS)
    w3, b3 = linear(k3, HIDDEN, N_ITEMS)
    return (w1, b1, w2, b2, w3, b3)


def pack_params(params):
    """Zero-pad to lane-dense shapes, fuse fc2|fc3, cast weights to bf16 (once)."""
    w1, b1, w2, b2, w3, b3 = params
    w1p = (
        jnp.zeros((INPUT_PAD, HIDDEN), jnp.float32)
        .at[:INPUT_SIZE, :].set(w1).astype(jnp.bfloat16)
    )
    w23 = (
        jnp.zeros((HIDDEN, HEADS_PAD), jnp.float32)
        .at[:, :N_ITEMS].set(w2)
        .at[:, ITEMS_PAD:ITEMS_PAD + N_ITEMS].set(w3)
        .astype(jnp.bfloat16)
    )
    b23 = (
        jnp.zeros((1, HEADS_PAD), jnp.float32)
        .at[:, :N_ITEMS].set(b2)
        .at[:, ITEMS_PAD:ITEMS_PAD + N_ITEMS].set(b3)
    )
    return (w1p, b1.astype(jnp.float32), w23, b23)


# ---------------------------------------------------------------------------
# Pure-JAX reference using the same (bf16-rounded) weights / activation casts.
# ---------------------------------------------------------------------------
def _reference(answers, packed_params):
    """Returns (interview logits[100], recommendation[100]) in f32."""
    w1, b1, w23, b23 = packed_params
    a = (
        jnp.zeros((1, INPUT_PAD), jnp.float32)
        .at[0, :INPUT_SIZE].set(answers.astype(jnp.float32))
        .astype(jnp.bfloat16).astype(jnp.float32)
    )
    h = jnp.tanh(a @ w1.astype(jnp.float32) + b1)
    h_bf = h.astype(jnp.bfloat16).astype(jnp.float32)
    heads = h_bf @ w23.astype(jnp.float32) + b23
    logits = heads[0, :N_ITEMS]
    rec = jnp.tanh(heads[0, ITEMS_PAD:ITEMS_PAD + N_ITEMS])
    return logits, rec


if __name__ == "__main__":
    key = jax.random.PRNGKey(0)
    pkey, xkey = jax.random.split(key)
    params = init_params(pkey)
    packed = pack_params(params)
    answers = jax.random.normal(xkey, (INPUT_SIZE,), jnp.float32)

    # Single fused launch producing BOTH heads (preferred usage).
    q, x = interviewing_nn_forward_both(answers, packed)
    jax.block_until_ready((q, x))

    # Flag-based API mirroring the PyTorch module (reuses the compiled call).
    q_flag = interviewing_nn_forward(answers, packed, interviewing=True)
    x_flag = interviewing_nn_forward(answers, packed, interviewing=False)
    jax.block_until_ready((q_flag, x_flag))

    ref_logits, ref_x = _reference(answers, packed)

    # --- checks ---------------------------------------------------------
    assert q.shape == (N_ITEMS,) and q.dtype == jnp.int32
    assert int(jnp.sum(q)) == 1, "output is not one-hot"
    assert jnp.array_equal(q, q_flag) and jnp.allclose(x, x_flag)

    # Argmax check is tolerance-based: bf16 MXU accumulation order can
    # legitimately flip a near-tie vs. the f32 reference matmul.
    kernel_idx = int(jnp.argmax(q))
    assert float(ref_logits[kernel_idx]) >= float(jnp.max(ref_logits)) - 1e-2, \
        "kernel argmax picked a lane far from the reference maximum"

    assert jnp.allclose(x, ref_x, atol=2e-2), "recommend-path mismatch"

    print("KERNEL_OK")
</pallas_src>

<mosaic_0001>
module attributes {stable_mosaic.version = 11 : i64} {
  func.func @_fused_kernel(%arg0: memref<1x200xf32, #tpu.memory_space<vmem>>, %arg1: memref<256x256xbf16, #tpu.memory_space<vmem>>, %arg2: memref<1x256xf32, #tpu.memory_space<vmem>>, %arg3: memref<256x256xbf16, #tpu.memory_space<vmem>>, %arg4: memref<1x256xf32, #tpu.memory_space<vmem>>, %arg5: memref<1x128xi32, #tpu.memory_space<vmem>>, %arg6: memref<1x128xf32, #tpu.memory_space<vmem>>, %arg7: memref<1x256xf32, #tpu.memory_space<vmem>>) attributes {dimension_semantics = [], scalar_prefetch = 0 : i64, scratch_operands = 1 : i64, tpu.core_type = #tpu.core_type<tc>} {
    %cst = arith.constant 0.000000e+00 : f32
    %0 = vector.broadcast %cst : f32 to vector<1x256xf32>
    %c0 = arith.constant 0 : index
    %c0_0 = arith.constant 0 : index
    %1 = vector.load %arg7[%c0, %c0_0] : memref<1x256xf32, #tpu.memory_space<vmem>>, vector<1x256xf32>
    tpu.vector_store %arg7[%c0, %c0_0], %0 {strides = array<i32>} : memref<1x256xf32, #tpu.memory_space<vmem>>, vector<1x256xf32>,
    %c0_1 = arith.constant 0 : index
    %c0_2 = arith.constant 0 : index
    %2 = vector.load %arg0[%c0_1, %c0_2] : memref<1x200xf32, #tpu.memory_space<vmem>>, vector<1x200xf32>
    %c0_3 = arith.constant 0 : index
    %c0_4 = arith.constant 0 : index
    %3 = vector.load %arg7[%c0_3, %c0_4] : memref<1x256xf32, #tpu.memory_space<vmem>>, vector<1x200xf32>
    tpu.vector_store %arg7[%c0_3, %c0_4], %2 {strides = array<i32>} : memref<1x256xf32, #tpu.memory_space<vmem>>, vector<1x200xf32>,
    %c0_5 = arith.constant 0 : index
    %c0_6 = arith.constant 0 : index
    %4 = vector.load %arg7[%c0_5, %c0_6] : memref<1x256xf32, #tpu.memory_space<vmem>>, vector<1x256xf32>
    %5 = arith.truncf %4 : vector<1x256xf32> to vector<1x256xbf16>
    %c0_7 = arith.constant 0 : index
    %c0_8 = arith.constant 0 : index
    %6 = vector.load %arg1[%c0_7, %c0_8] : memref<256x256xbf16, #tpu.memory_space<vmem>>, vector<256x256xbf16>
    %cst_9 = arith.constant dense<0.000000e+00> : vector<1x256xf32>
    %7 = tpu.matmul %5, %6, %cst_9 {dimension_numbers = #tpu.dot_dimension_numbers<[1], [0], [0], [1], [0, 0, 1, 1], [], []>} : vector<1x256xbf16>, vector<256x256xbf16>, vector<1x256xf32> -> vector<1x256xf32>
    %c0_10 = arith.constant 0 : index
    %c0_11 = arith.constant 0 : index
    %8 = vector.load %arg2[%c0_10, %c0_11] : memref<1x256xf32, #tpu.memory_space<vmem>>, vector<1x256xf32>
    %9 = arith.addf %7, %8 : vector<1x256xf32>
    %10 = math.tanh %9 : vector<1x256xf32>
    %11 = arith.truncf %10 : vector<1x256xf32> to vector<1x256xbf16>
    %c0_12 = arith.constant 0 : index
    %c0_13 = arith.constant 0 : index
    %12 = vector.load %arg3[%c0_12, %c0_13] : memref<256x256xbf16, #tpu.memory_space<vmem>>, vector<256x256xbf16>
    %cst_14 = arith.constant dense<0.000000e+00> : vector<1x256xf32>
    %13 = tpu.matmul %11, %12, %cst_14 {dimension_numbers = #tpu.dot_dimension_numbers<[1], [0], [0], [1], [0, 0, 1, 1], [], []>} : vector<1x256xbf16>, vector<256x256xbf16>, vector<1x256xf32> -> vector<1x256xf32>
    %c0_15 = arith.constant 0 : index
    %c0_16 = arith.constant 0 : index
    %14 = vector.load %arg4[%c0_15, %c0_16] : memref<1x256xf32, #tpu.memory_space<vmem>>, vector<1x256xf32>
    %15 = arith.addf %13, %14 : vector<1x256xf32>
    %16 = vector.extract_strided_slice %15 {offsets = [0, 0], sizes = [1, 128], strides = [1, 1]} : vector<1x256xf32> to vector<1x128xf32>
    %17 = vector.extract_strided_slice %15 {offsets = [0, 128], sizes = [1, 128], strides = [1, 1]} : vector<1x256xf32> to vector<1x128xf32>
    %18 = tpu.iota {dimensions = array<i32: 1>} : vector<1x128xi32>
    %c100_i32 = arith.constant 100 : i32
    %19 = vector.broadcast %c100_i32 : i32 to vector<1x128xi32>
    %20 = arith.cmpi slt, %18, %19 : vector<1x128xi32>
    %cst_17 = arith.constant 0xFF800000 : f32
    %21 = vector.broadcast %cst_17 : f32 to vector<1x128xf32>
    %22 = arith.select %20, %16, %21 : vector<1x128xi1>, vector<1x128xf32>
    %23 = vector.shape_cast %22 : vector<1x128xf32> to vector<1x1x128xf32>
    %cst_18 = arith.constant dense<0xFF800000> : vector<1xf32>
    %24 = vector.multi_reduction <maximumf>, %23, %cst_18 [1, 2] : vector<1x1x128xf32> to vector<1xf32>
    %25 = vector.shape_cast %24 : vector<1xf32> to vector<1x1x1xf32>
    %26 = vector.extract %25[0, 0, 0] : f32 from vector<1x1x1xf32>
    %27 = vector.broadcast %26 : f32 to vector<1x128xf32>
    %28 = arith.cmpf oeq, %22, %27 : vector<1x128xf32>
    %c128_i32 = arith.constant 128 : i32
    %29 = vector.broadcast %c128_i32 : i32 to vector<1x128xi32>
    %30 = arith.select %28, %18, %29 : vector<1x128xi1>, vector<1x128xi32>
    %31 = vector.shape_cast %30 : vector<1x128xi32> to vector<1x1x128xi32>
    %cst_19 = arith.constant dense<2147483647> : vector<1xi32>
    %32 = vector.multi_reduction <minsi>, %31, %cst_19 [1, 2] : vector<1x1x128xi32> to vector<1xi32>
    %33 = vector.shape_cast %32 : vector<1xi32> to vector<1x1x1xi32>
    %34 = vector.extract %33[0, 0, 0] : i32 from vector<1x1x1xi32>
    %35 = vector.broadcast %34 : i32 to vector<1x128xi32>
    %36 = arith.cmpi eq, %18, %35 : vector<1x128xi32>
    %37 = arith.extui %36 : vector<1x128xi1> to vector<1x128xi32>
    %c0_20 = arith.constant 0 : index
    %c0_21 = arith.constant 0 : index
    %38 = vector.load %arg5[%c0_20, %c0_21] : memref<1x128xi32, #tpu.memory_space<vmem>>, vector<1x128xi32>
    tpu.vector_store %arg5[%c0_20, %c0_21], %37 {strides = array<i32>} : memref<1x128xi32, #tpu.memory_space<vmem>>, vector<1x128xi32>,
    %39 = math.tanh %17 : vector<1x128xf32>
    %c0_22 = arith.constant 0 : index
    %c0_23 = arith.constant 0 : index
    %40 = vector.load %arg6[%c0_22, %c0_23] : memref<1x128xf32, #tpu.memory_space<vmem>>, vector<1x128xf32>
    tpu.vector_store %arg6[%c0_22, %c0_23], %39 {strides = array<i32>} : memref<1x128xf32, #tpu.memory_space<vmem>>, vector<1x128xf32>,
    return
  }
}

</mosaic_0001>

<llo_original>
// kernel: _forward_both.1
$region0: #{_forward_both.1}
  #allocation0 [shape = 'u32[]', space=smem, size = 0x4, offset = 0x4, fixed_abs, tag = 'smem constant byte address 0x4 - core index']
  #allocation1 [shape = 'u32[72,128]{1,0:T(1,128)}', space=vmem, size = 0x9000, scoped, tag = 'internal scratch']
  #allocation2 [shape = 'f32[1,256]{1,0:T(1,128)}', space=vmem, size = 0x400, scoped, tag = 'scratch operand']
  %s0 = inlined_call_operand.hbm [shape: f32[1,200], index: 0, kind: input, shape index: {}]
  %s1 = inlined_call_operand.hbm [shape: bf16[256,256], index: 1, kind: input, shape index: {}]
  %s2 = inlined_call_operand.vmem [shape: f32[1,256], index: 2, kind: input, shape index: {}]
  %s3 = inlined_call_operand.hbm [shape: bf16[256,256], index: 3, kind: input, shape index: {}]
  %s4 = inlined_call_operand.vmem [shape: f32[1,256], index: 4, kind: input, shape index: {}]
  %s5 = inlined_call_operand.vmem [shape: s32[1,128], index: 5, kind: output, shape index: {0}]
  %s6 = inlined_call_operand.vmem [shape: f32[1,128], index: 6, kind: output, shape index: {1}]
  %7 = xla_tuple %s5, %s6
  %s8 = sld [smem:[#allocation0]]
  $region50: #{_forward_both.1} parent=0
    _
  %s10 = ssub.s32 1, %s8
  %s11 = scalar_select 0, %s10, %s8
  $region1: #{_forward_both.1} parent=0
    #allocation3 [shape = 'u8[1024]{0}', space=vmem, size = 0x400, scoped, tag = 'input window, operand 0, single buffered']
    #allocation4 [shape = 's32[1]{0}', space=sflag, size = 0x4, scoped, tag = 'scoped memory for _forward_both.1']
    #allocation5 [shape = 'u8[131072]{0}', space=vmem, size = 0x20000, scoped, tag = 'input window, operand 1, single buffered']
    #allocation6 [shape = 's32[1]{0}', space=sflag, size = 0x4, scoped, tag = 'scoped memory for _forward_both.1']
    #allocation7 [shape = 'u8[131072]{0}', space=vmem, size = 0x20000, scoped, tag = 'input window, operand 3, single buffered']
    %12 = vsyncpa [#allocation4], 0
    %13 = vsyncpa [#allocation6], 0
    // Predicated region
    $region2: #{_forward_both.1} parent=1 // pred_check
      _
    $region3: #{_forward_both.1} parent=1 // pred_check_branch
      %15 = sbr.rel (0) target = $region5
    $region4: #{_forward_both.1} parent=1 // pred_region
      %17 = vsyncadd [#allocation4], 0
      %s19 = sshll.u32 %s0, 4
      %s20 = int_to_ptr.hbm [resolvable:$true] %s19
      %s21 = sshll.u32 [#allocation3], 4
      %s22 = int_to_ptr.vmem [resolvable:$true] %s21
      %24 = dma.hbm_to_vmem [thread:$0]  %s20, 32, %s22, [#allocation4]
    $region5: #{_forward_both.1} parent=1 // pred_fallthru
      _
    // Predicated region
    $region6: #{_forward_both.1} parent=1 // pred_check
      _
    $region7: #{_forward_both.1} parent=1 // pred_check_branch
      %26 = sbr.rel (0) target = $region9
    $region8: #{_forward_both.1} parent=1 // pred_region
      %28 = vsyncadd [#allocation6], 0
      %s29 = sshll.u32 %s1, 4
      %s30 = int_to_ptr.hbm [resolvable:$true] %s29
      %s31 = sshll.u32 [#allocation5], 4
      %s32 = int_to_ptr.vmem [resolvable:$true] %s31
      %37 = dma.hbm_to_vmem [thread:$0]  %s30, 4096, %s32, [#allocation6], 128, 128, 8
    $region9: #{_forward_both.1} parent=1 // pred_fallthru
      _
    // Predicated region
    $region10: #{_forward_both.1} parent=1 // pred_check
      _
    $region11: #{_forward_both.1} parent=1 // pred_check_branch
      %39 = sbr.rel (0) target = $region13
    $region12: #{_forward_both.1} parent=1 // pred_region
      _
    $region13: #{_forward_both.1} parent=1 // pred_fallthru
      _
    // Predicated region
    $region14: #{_forward_both.1} parent=1 // pred_check
      _
    $region15: #{_forward_both.1} parent=1 // pred_check_branch
      %41 = sbr.rel (0) target = $region17
    $region16: #{_forward_both.1} parent=1 // pred_region
      %43 = vsyncadd [#allocation6], 0
      %s44 = sshll.u32 %s3, 4
      %s45 = int_to_ptr.hbm [resolvable:$true] %s44
      %s46 = sshll.u32 [#allocation7], 4
      %s47 = int_to_ptr.vmem [resolvable:$true] %s46
      %52 = dma.hbm_to_vmem [thread:$0]  %s45, 4096, %s47, [#allocation6], 128, 128, 8
    $region17: #{_forward_both.1} parent=1 // pred_fallthru
      _
    // Predicated region
    $region18: #{_forward_both.1} parent=1 // pred_check
      _
    $region19: #{_forward_both.1} parent=1 // pred_check_branch
      %54 = sbr.rel (0) target = $region21
    $region20: #{_forward_both.1} parent=1 // pred_region
      _
    $region21: #{_forward_both.1} parent=1 // pred_fallthru
      _
    // Predicated region
    $region22: #{_forward_both.1} parent=1 // pred_check
      _
    $region23: #{_forward_both.1} parent=1 // pred_check_branch
      %56 = sbr.rel (0) target = $region25
    $region24: #{_forward_both.1} parent=1 // pred_region
      %58 = dma.done [#allocation4], 32
    $region25: #{_forward_both.1} parent=1 // pred_fallthru
      _
    // Predicated region
    $region26: #{_forward_both.1} parent=1 // pred_check
      _
    $region27: #{_forward_both.1} parent=1 // pred_check_branch
      %60 = sbr.rel (0) target = $region29
    $region28: #{_forward_both.1} parent=1 // pred_region
      %62 = dma.done [#allocation6], 4096
    $region29: #{_forward_both.1} parent=1 // pred_fallthru
      _
    // Predicated region
    $region30: #{_forward_both.1} parent=1 // pred_check
      _
    $region31: #{_forward_both.1} parent=1 // pred_check_branch
      %64 = sbr.rel (0) target = $region33
    $region32: #{_forward_both.1} parent=1 // pred_region
      %66 = dma.done [#allocation6], 4096
    $region33: #{_forward_both.1} parent=1 // pred_fallthru
      _
    %v67 = vlaneseq
    %vm68 = vcmp.ge.s32.totalorder %v67, 0
    %vm69 = vcmp.lt.s32.totalorder %v67, 256
    %vm70 = vmand %vm68, %vm69
    %71 = vst.msk [vmem:[#allocation2] sm:$0x3] %vm70, 0.0
    %v72 = vld [vmem:[#allocation3] sm:$0x3]
    %vm73 = vcmp.lt.s32.totalorder %v67, 200
    %vm74 = vmand %vm68, %vm73
    %75 = vst.msk [vmem:[#allocation2] sm:$0x3] %vm74, %v72
    %v76 = vld [vmem:[#allocation2] sm:$0x3]
    %v78 = vperm.slane %v76, 0
    %v79 = vperm.slane %v76, 1
    %v82 = vpack.c.bf16 %v78, %v78
    %v83 = vpack.c.bf16 %v79, %v79
    %v84 = vld [vmem:[#allocation5] sm:$0xff]
    %v85 = vld [vmem:[#allocation5 + $0x8] sm:$0xff]
    %v86 = vld [vmem:[#allocation5 + $0x10] sm:$0xff]
    %v87 = vld [vmem:[#allocation5 + $0x18] sm:$0xff]
    %v88 = vld [vmem:[#allocation5 + $0x20] sm:$0xff]
    %v89 = vld [vmem:[#allocation5 + $0x28] sm:$0xff]
    %v90 = vld [vmem:[#allocation5 + $0x30] sm:$0xff]
    %v91 = vld [vmem:[#allocation5 + $0x38] sm:$0xff]
    %v92 = vld [vmem:[#allocation5 + $0x40] sm:$0xff]
    %v93 = vld [vmem:[#allocation5 + $0x48] sm:$0xff]
    %v94 = vld [vmem:[#allocation5 + $0x50] sm:$0xff]
    %v95 = vld [vmem:[#allocation5 + $0x58] sm:$0xff]
    %v96 = vld [vmem:[#allocation5 + $0x60] sm:$0xff]
    %v97 = vld [vmem:[#allocation5 + $0x68] sm:$0xff]
    %v98 = vld [vmem:[#allocation5 + $0x70] sm:$0xff]
    %v99 = vld [vmem:[#allocation5 + $0x78] sm:$0xff]
    %v100 = vld [vmem:[#allocation5 + $0x80] sm:$0xff]
    %v101 = vld [vmem:[#allocation5 + $0x88] sm:$0xff]
    %v102 = vld [vmem:[#allocation5 + $0x90] sm:$0xff]
    %v103 = vld [vmem:[#allocation5 + $0x98] sm:$0xff]
    %v104 = vld [vmem:[#allocation5 + $0xa0] sm:$0xff]
    %v105 = vld [vmem:[#allocation5 + $0xa8] sm:$0xff]
    %v106 = vld [vmem:[#allocation5 + $0xb0] sm:$0xff]
    %v107 = vld [vmem:[#allocation5 + $0xb8] sm:$0xff]
    %v108 = vld [vmem:[#allocation5 + $0xc0] sm:$0xff]
    %v109 = vld [vmem:[#allocation5 + $0xc8] sm:$0xff]
    %v110 = vld [vmem:[#allocation5 + $0xd0] sm:$0xff]
    %v111 = vld [vmem:[#allocation5 + $0xd8] sm:$0xff]
    %v112 = vld [vmem:[#allocation5 + $0xe0] sm:$0xff]
    %v113 = vld [vmem:[#allocation5 + $0xe8] sm:$0xff]
    %v114 = vld [vmem:[#allocation5 + $0xf0] sm:$0xff]
    %v115 = vld [vmem:[#allocation5 + $0xf8] sm:$0xff]
    %v116 = vld [vmem:[%s2] sm:$0x3]
    %v149 = vunpack.c.l.b16 %v84
    %v150 = vunpack.c.h.b16 %v84
    %v151 = vunpack.c.l.b16 %v85
    %v152 = vunpack.c.h.b16 %v85
    %v153 = vunpack.c.l.b16 %v86
    %v154 = vunpack.c.h.b16 %v86
    %v155 = vunpack.c.l.b16 %v87
    %v156 = vunpack.c.h.b16 %v87
    %v157 = vunpack.c.l.b16 %v88
    %v158 = vunpack.c.h.b16 %v88
    %v159 = vunpack.c.l.b16 %v89
    %v160 = vunpack.c.h.b16 %v89
    %v161 = vunpack.c.l.b16 %v90
    %v162 = vunpack.c.h.b16 %v90
    %v163 = vunpack.c.l.b16 %v91
    %v164 = vunpack.c.h.b16 %v91
    %v165 = vunpack.c.l.b16 %v92
    %v166 = vunpack.c.h.b16 %v92
    %v167 = vunpack.c.l.b16 %v93
    %v168 = vunpack.c.h.b16 %v93
    %v169 = vunpack.c.l.b16 %v94
    %v170 = vunpack.c.h.b16 %v94
    %v171 = vunpack.c.l.b16 %v95
    %v172 = vunpack.c.h.b16 %v95
    %v173 = vunpack.c.l.b16 %v96
    %v174 = vunpack.c.h.b16 %v96
    %v175 = vunpack.c.l.b16 %v97
    %v176 = vunpack.c.h.b16 %v97
    %v177 = vunpack.c.l.b16 %v98
    %v178 = vunpack.c.h.b16 %v98
    %v179 = vunpack.c.l.b16 %v99
    %v180 = vunpack.c.h.b16 %v99
    %v181 = vunpack.c.l.b16 %v100
    %v182 = vunpack.c.h.b16 %v100
    %v183 = vunpack.c.l.b16 %v101
    %v184 = vunpack.c.h.b16 %v101
    %v185 = vunpack.c.l.b16 %v102
    %v186 = vunpack.c.h.b16 %v102
    %v187 = vunpack.c.l.b16 %v103
    %v188 = vunpack.c.h.b16 %v103
    %v189 = vunpack.c.l.b16 %v104
    %v190 = vunpack.c.h.b16 %v104
    %v191 = vunpack.c.l.b16 %v105
    %v192 = vunpack.c.h.b16 %v105
    %v193 = vunpack.c.l.b16 %v106
    %v194 = vunpack.c.h.b16 %v106
    %v195 = vunpack.c.l.b16 %v107
    %v196 = vunpack.c.h.b16 %v107
    %v197 = vunpack.c.l.b16 %v108
    %v198 = vunpack.c.h.b16 %v108
    %v199 = vunpack.c.l.b16 %v109
    %v200 = vunpack.c.h.b16 %v109
    %v201 = vunpack.c.l.b16 %v110
    %v202 = vunpack.c.h.b16 %v110
    %v203 = vunpack.c.l.b16 %v111
    %v204 = vunpack.c.h.b16 %v111
    %v205 = vunpack.c.l.b16 %v112
    %v206 = vunpack.c.h.b16 %v112
    %v207 = vunpack.c.l.b16 %v113
    %v208 = vunpack.c.h.b16 %v113
    %v209 = vunpack.c.l.b16 %v114
    %v210 = vunpack.c.h.b16 %v114
    %v211 = vunpack.c.l.b16 %v115
    %v212 = vunpack.c.h.b16 %v115
    %v213 = vpack.c.b16 %v151, %v149
    %v214 = vpack.c.b16 %v152, %v150
    %v215 = vpack.c.b16 %v155, %v153
    %v216 = vpack.c.b16 %v156, %v154
    %v217 = vpack.c.b16 %v159, %v157
    %v218 = vpack.c.b16 %v160, %v158
    %v219 = vpack.c.b16 %v163, %v161
    %v220 = vpack.c.b16 %v164, %v162
    %v221 = vpack.c.b16 %v167, %v165
    %v222 = vpack.c.b16 %v168, %v166
    %v223 = vpack.c.b16 %v171, %v169
    %v224 = vpack.c.b16 %v172, %v170
    %v225 = vpack.c.b16 %v175, %v173
    %v226 = vpack.c.b16 %v176, %v174
    %v227 = vpack.c.b16 %v179, %v177
    %v228 = vpack.c.b16 %v180, %v178
    %v229 = vpack.c.b16 %v183, %v181
    %v230 = vpack.c.b16 %v184, %v182
    %v231 = vpack.c.b16 %v187, %v185
    %v232 = vpack.c.b16 %v188, %v186
    %v233 = vpack.c.b16 %v191, %v189
    %v234 = vpack.c.b16 %v192, %v190
    %v235 = vpack.c.b16 %v195, %v193
    %v236 = vpack.c.b16 %v196, %v194
    %v237 = vpack.c.b16 %v199, %v197
    %v238 = vpack.c.b16 %v200, %v198
    %v239 = vpack.c.b16 %v203, %v201
    %v240 = vpack.c.b16 %v204, %v202
    %v241 = vpack.c.b16 %v207, %v205
    %v242 = vpack.c.b16 %v208, %v206
    %v243 = vpack.c.b16 %v211, %v209
    %v244 = vpack.c.b16 %v212, %v210
    %v278 = vperm.slane %v116, 0
    %v279 = vperm.slane %v116, 1
    %282 = vmatpush.bf16.msra.mxu0 %v227
    %283 = vmatpush.bf16.msra.mxu0 %v225
    %284 = vmatpush.bf16.msra.mxu0 %v223
    %285 = vmatpush.bf16.msra.mxu0 %v221
    %286 = vmatpush.bf16.msra.mxu0 %v219
    %287 = vmatpush.bf16.msra.mxu0 %v217
    %288 = vmatpush.bf16.msra.mxu0 %v215
    %289 = vmatpush.bf16.msra.mxu0 %v213
    %290 = vmatmul.bf16.gmra.mxu0 %v82
    %v291 = vpop.f32.mrf.mxu0
    %v292 = vadd.f32 %v278, %v291
    %v293 = vpop.f32.mrf.mxu0
    %294 = vdwg.mxu0
    %295 = vmatpush.bf16.msra.mxu0 %v243
    %296 = vmatpush.bf16.msra.mxu0 %v241
    %297 = vmatpush.bf16.msra.mxu0 %v239
    %298 = vmatpush.bf16.msra.mxu0 %v237
    %299 = vmatpush.bf16.msra.mxu0 %v235
    %300 = vmatpush.bf16.msra.mxu0 %v233
    %301 = vmatpush.bf16.msra.mxu0 %v231
    %302 = vmatpush.bf16.msra.mxu0 %v229
    %303 = vmatmul.bf16.gmra.mxu0 %v83
    %v304 = vpop.f32.mrf.mxu0
    %v305 = vadd.f32 %v292, %v304
    %v306 = vpop.f32.mrf.mxu0
    %307 = vdwg.mxu0
    %308 = vmatpush.bf16.msra.mxu0 %v228
    %309 = vmatpush.bf16.msra.mxu0 %v226
    %310 = vmatpush.bf16.msra.mxu0 %v224
    %311 = vmatpush.bf16.msra.mxu0 %v222
    %312 = vmatpush.bf16.msra.mxu0 %v220
    %313 = vmatpush.bf16.msra.mxu0 %v218
    %314 = vmatpush.bf16.msra.mxu0 %v216
    %315 = vmatpush.bf16.msra.mxu0 %v214
    %316 = vmatmul.bf16.gmra.mxu0 %v82
    %v317 = vpop.f32.mrf.mxu0
    %v318 = vadd.f32 %v279, %v317
    %v319 = vpop.f32.mrf.mxu0
    %320 = vdwg.mxu0
    %321 = vmatpush.bf16.msra.mxu0 %v244
    %322 = vmatpush.bf16.msra.mxu0 %v242
    %323 = vmatpush.bf16.msra.mxu0 %v240
    %324 = vmatpush.bf16.msra.mxu0 %v238
    %325 = vmatpush.bf16.msra.mxu0 %v236
    %326 = vmatpush.bf16.msra.mxu0 %v234
    %327 = vmatpush.bf16.msra.mxu0 %v232
    %328 = vmatpush.bf16.msra.mxu0 %v230
    %329 = vmatmul.bf16.gmra.mxu0 %v83
    %v330 = vpop.f32.mrf.mxu0
    %v331 = vadd.f32 %v318, %v330
    %v332 = vpop.f32.mrf.mxu0
    %333 = vdwg.mxu0
    %v334 = vtanh.pop %v305
    %v335 = vtanh.pop %v331
    %v336 = vpack.c.bf16 %v334, %v334
    %v337 = vpack.c.bf16 %v335, %v335
    %v338 = vld [vmem:[#allocation7] sm:$0xff]
    %v339 = vld [vmem:[#allocation7 + $0x8] sm:$0xff]
    %v340 = vld [vmem:[#allocation7 + $0x10] sm:$0xff]
    %v341 = vld [vmem:[#allocation7 + $0x18] sm:$0xff]
    %v342 = vld [vmem:[#allocation7 + $0x20] sm:$0xff]
    %v343 = vld [vmem:[#allocation7 + $0x28] sm:$0xff]
    %v344 = vld [vmem:[#allocation7 + $0x30] sm:$0xff]
    %v345 = vld [vmem:[#allocation7 + $0x38] sm:$0xff]
    %v346 = vld [vmem:[#allocation7 + $0x40] sm:$0xff]
    %v347 = vld [vmem:[#allocation7 + $0x48] sm:$0xff]
    %v348 = vld [vmem:[#allocation7 + $0x50] sm:$0xff]
    %v349 = vld [vmem:[#allocation7 + $0x58] sm:$0xff]
    %v350 = vld [vmem:[#allocation7 + $0x60] sm:$0xff]
    %v351 = vld [vmem:[#allocation7 + $0x68] sm:$0xff]
    %v352 = vld [vmem:[#allocation7 + $0x70] sm:$0xff]
    %v353 = vld [vmem:[#allocation7 + $0x78] sm:$0xff]
    %v354 = vld [vmem:[#allocation7 + $0x80] sm:$0xff]
    %v355 = vld [vmem:[#allocation7 + $0x88] sm:$0xff]
    %v356 = vld [vmem:[#allocation7 + $0x90] sm:$0xff]
    %v357 = vld [vmem:[#allocation7 + $0x98] sm:$0xff]
    %v358 = vld [vmem:[#allocation7 + $0xa0] sm:$0xff]
    %v359 = vld [vmem:[#allocation7 + $0xa8] sm:$0xff]
    %v360 = vld [vmem:[#allocation7 + $0xb0] sm:$0xff]
    %v361 = vld [vmem:[#allocation7 + $0xb8] sm:$0xff]
    %v362 = vld [vmem:[#allocation7 + $0xc0] sm:$0xff]
    %v363 = vld [vmem:[#allocation7 + $0xc8] sm:$0xff]
    %v364 = vld [vmem:[#allocation7 + $0xd0] sm:$0xff]
    %v365 = vld [vmem:[#allocation7 + $0xd8] sm:$0xff]
    %v366 = vld [vmem:[#allocation7 + $0xe0] sm:$0xff]
    %v367 = vld [vmem:[#allocation7 + $0xe8] sm:$0xff]
    %v368 = vld [vmem:[#allocation7 + $0xf0] sm:$0xff]
    %v369 = vld [vmem:[#allocation7 + $0xf8] sm:$0xff]
    %v370 = vld [vmem:[%s4] sm:$0x3]
    %v403 = vunpack.c.l.b16 %v338
    %v404 = vunpack.c.h.b16 %v338
    %v405 = vunpack.c.l.b16 %v339
    %v406 = vunpack.c.h.b16 %v339
    %v407 = vunpack.c.l.b16 %v340
    %v408 = vunpack.c.h.b16 %v340
    %v409 = vunpack.c.l.b16 %v341
    %v410 = vunpack.c.h.b16 %v341
    %v411 = vunpack.c.l.b16 %v342
    %v412 = vunpack.c.h.b16 %v342
    %v413 = vunpack.c.l.b16 %v343
    %v414 = vunpack.c.h.b16 %v343
    %v415 = vunpack.c.l.b16 %v344
    %v416 = vunpack.c.h.b16 %v344
    %v417 = vunpack.c.l.b16 %v345
    %v418 = vunpack.c.h.b16 %v345
    %v419 = vunpack.c.l.b16 %v346
    %v420 = vunpack.c.h.b16 %v346
    %v421 = vunpack.c.l.b16 %v347
    %v422 = vunpack.c.h.b16 %v347
    %v423 = vunpack.c.l.b16 %v348
    %v424 = vunpack.c.h.b16 %v348
    %v425 = vunpack.c.l.b16 %v349
    %v426 = vunpack.c.h.b16 %v349
    %v427 = vunpack.c.l.b16 %v350
    %v428 = vunpack.c.h.b16 %v350
    %v429 = vunpack.c.l.b16 %v351
    %v430 = vunpack.c.h.b16 %v351
    %v431 = vunpack.c.l.b16 %v352
    %v432 = vunpack.c.h.b16 %v352
    %v433 = vunpack.c.l.b16 %v353
    %v434 = vunpack.c.h.b16 %v353
    %v435 = vunpack.c.l.b16 %v354
    %v436 = vunpack.c.h.b16 %v354
    %v437 = vunpack.c.l.b16 %v355
    %v438 = vunpack.c.h.b16 %v355
    %v439 = vunpack.c.l.b16 %v356
    %v440 = vunpack.c.h.b16 %v356
    %v441 = vunpack.c.l.b16 %v357
    %v442 = vunpack.c.h.b16 %v357
    %v443 = vunpack.c.l.b16 %v358
    %v444 = vunpack.c.h.b16 %v358
    %v445 = vunpack.c.l.b16 %v359
    %v446 = vunpack.c.h.b16 %v359
    %v447 = vunpack.c.l.b16 %v360
    %v448 = vunpack.c.h.b16 %v360
    %v449 = vunpack.c.l.b16 %v361
    %v450 = vunpack.c.h.b16 %v361
    %v451 = vunpack.c.l.b16 %v362
    %v452 = vunpack.c.h.b16 %v362
    %v453 = vunpack.c.l.b16 %v363
    %v454 = vunpack.c.h.b16 %v363
    %v455 = vunpack.c.l.b16 %v364
    %v456 = vunpack.c.h.b16 %v364
    %v457 = vunpack.c.l.b16 %v365
    %v458 = vunpack.c.h.b16 %v365
    %v459 = vunpack.c.l.b16 %v366
    %v460 = vunpack.c.h.b16 %v366
    %v461 = vunpack.c.l.b16 %v367
    %v462 = vunpack.c.h.b16 %v367
    %v463 = vunpack.c.l.b16 %v368
    %v464 = vunpack.c.h.b16 %v368
    %v465 = vunpack.c.l.b16 %v369
    %v466 = vunpack.c.h.b16 %v369
    %v467 = vpack.c.b16 %v405, %v403
    %v468 = vpack.c.b16 %v406, %v404
    %v469 = vpack.c.b16 %v409, %v407
    %v470 = vpack.c.b16 %v410, %v408
    %v471 = vpack.c.b16 %v413, %v411
    %v472 = vpack.c.b16 %v414, %v412
    %v473 = vpack.c.b16 %v417, %v415
    %v474 = vpack.c.b16 %v418, %v416
    %v475 = vpack.c.b16 %v421, %v419
    %v476 = vpack.c.b16 %v422, %v420
    %v477 = vpack.c.b16 %v425, %v423
    %v478 = vpack.c.b16 %v426, %v424
    %v479 = vpack.c.b16 %v429, %v427
    %v480 = vpack.c.b16 %v430, %v428
    %v481 = vpack.c.b16 %v433, %v431
    %v482 = vpack.c.b16 %v434, %v432
    %v483 = vpack.c.b16 %v437, %v435
    %v484 = vpack.c.b16 %v438, %v436
    %v485 = vpack.c.b16 %v441, %v439
    %v486 = vpack.c.b16 %v442, %v440
    %v487 = vpack.c.b16 %v445, %v443
    %v488 = vpack.c.b16 %v446, %v444
    %v489 = vpack.c.b16 %v449, %v447
    %v490 = vpack.c.b16 %v450, %v448
    %v491 = vpack.c.b16 %v453, %v451
    %v492 = vpack.c.b16 %v454, %v452
    %v493 = vpack.c.b16 %v457, %v455
    %v494 = vpack.c.b16 %v458, %v456
    %v495 = vpack.c.b16 %v461, %v459
    %v496 = vpack.c.b16 %v462, %v460
    %v497 = vpack.c.b16 %v465, %v463
    %v498 = vpack.c.b16 %v466, %v464
    %v532 = vperm.slane %v370, 0
    %v533 = vperm.slane %v370, 1
    %536 = vmatpush.bf16.msra.mxu0 %v481
    %537 = vmatpush.bf16.msra.mxu0 %v479
    %538 = vmatpush.bf16.msra.mxu0 %v477
    %539 = vmatpush.bf16.msra.mxu0 %v475
    %540 = vmatpush.bf16.msra.mxu0 %v473
    %541 = vmatpush.bf16.msra.mxu0 %v471
    %542 = vmatpush.bf16.msra.mxu0 %v469
    %543 = vmatpush.bf16.msra.mxu0 %v467
    %544 = vmatmul.bf16.gmra.mxu0 %v336
    %v545 = vpop.f32.mrf.mxu0
    %v546 = vadd.f32 %v532, %v545
    %v547 = vpop.f32.mrf.mxu0
    %548 = vdwg.mxu0
    %549 = vmatpush.bf16.msra.mxu0 %v497
    %550 = vmatpush.bf16.msra.mxu0 %v495
    %551 = vmatpush.bf16.msra.mxu0 %v493
    %552 = vmatpush.bf16.msra.mxu0 %v491
    %553 = vmatpush.bf16.msra.mxu0 %v489
    %554 = vmatpush.bf16.msra.mxu0 %v487
    %555 = vmatpush.bf16.msra.mxu0 %v485
    %556 = vmatpush.bf16.msra.mxu0 %v483
    %557 = vmatmul.bf16.gmra.mxu0 %v337
    %v558 = vpop.f32.mrf.mxu0
    %v559 = vadd.f32 %v546, %v558
    %v560 = vpop.f32.mrf.mxu0
    %561 = vdwg.mxu0
    %562 = vmatpush.bf16.msra.mxu0 %v482
    %563 = vmatpush.bf16.msra.mxu0 %v480
    %564 = vmatpush.bf16.msra.mxu0 %v478
    %565 = vmatpush.bf16.msra.mxu0 %v476
    %566 = vmatpush.bf16.msra.mxu0 %v474
    %567 = vmatpush.bf16.msra.mxu0 %v472
    %568 = vmatpush.bf16.msra.mxu0 %v470
    %569 = vmatpush.bf16.msra.mxu0 %v468
    %570 = vmatmul.bf16.gmra.mxu0 %v336
    %v571 = vpop.f32.mrf.mxu0
    %v572 = vadd.f32 %v533, %v571
    %v573 = vpop.f32.mrf.mxu0
    %574 = vdwg.mxu0
    %575 = vmatpush.bf16.msra.mxu0 %v498
    %576 = vmatpush.bf16.msra.mxu0 %v496
    %577 = vmatpush.bf16.msra.mxu0 %v494
    %578 = vmatpush.bf16.msra.mxu0 %v492
    %579 = vmatpush.bf16.msra.mxu0 %v490
    %580 = vmatpush.bf16.msra.mxu0 %v488
    %581 = vmatpush.bf16.msra.mxu0 %v486
    %582 = vmatpush.bf16.msra.mxu0 %v484
    %583 = vmatmul.bf16.gmra.mxu0 %v337
    %v584 = vpop.f32.mrf.mxu0
    %v585 = vadd.f32 %v572, %v584
    %v586 = vpop.f32.mrf.mxu0
    %587 = vdwg.mxu0
    %v588 = vlaneseq
    %v589 = vand.u32 %v588, 127
    %vm590 = vcmp.lt.s32.totalorder %v589, 100
    %v591 = vsel %vm590, %v559, -inf
    %vm592 = vcmask 1040384
    %v593 = vsel %vm592, %v591, -inf
    %594 = vmax.xlane.f32.xlu0 %v593
    %v595 = vpop.xlane.xlu0 %594
    %v596 = vrot.slane %v595, 4
    %v597 = vmax.f32 %v595, %v596
    %v598 = vrot.slane %v597, 2
    %v599 = vmax.f32 %v597, %v598
    %v600 = vrot.slane %v599, 1
    %v601 = vmax.f32 %v599, %v600
    %s602 = vtos %v601
    %v603 = vstv %s602
    %vm604 = vcmp.eq.f32.partialorder %v591, %v603
    %v605 = vsel %vm604, %v589, 128
    %v606 = vsel %vm592, %v605, 2147483647
    %v607 = vand.u32 %v606, 65535
    %v608 = vshra.s32 %v606, 16
    %v609 = vcvt.s32.f32 %v607
    %v610 = vcvt.s32.f32 %v608
    %611 = vmin.xlane.f32.xlu0 %v610
    %v612 = vpop.xlane.xlu0 %611
    %vm613 = vcmp.eq.f32.partialorder %v610, %v612
    %v614 = vsel %vm613, %v609, inf
    %615 = vmin.xlane.f32.xlu0 %v614
    %v616 = vpop.xlane.xlu0 %615
    %v617 = vcvt.f32.s32 %v616
    %v618 = vcvt.f32.s32 %v612
    %v619 = vshll.u32 %v618, 16
    %v620 = vadd.s32 %v619, %v617
    %v621 = vrot.slane %v620, 4
    %vm622 = vcmp.lt.s32.totalorder %v620, %v621
    %v623 = vsel %vm622, %v620, %v621
    %v624 = vrot.slane %v623, 2
    %vm625 = vcmp.lt.s32.totalorder %v623, %v624
    %v626 = vsel %vm625, %v623, %v624
    %v627 = vrot.slane %v626, 1
    %vm628 = vcmp.lt.s32.totalorder %v626, %v627
    %v629 = vsel %vm628, %v626, %v627
    %s630 = vtos %v629
    %v631 = vstv %s630
    %vm632 = vcmp.eq.s32.totalorder %v589, %v631
    %v633 = vsel %vm632, 1, 0
    %634 = vst [vmem:[%s5] sm:$0x1] %v633
    %v635 = vtanh.pop %v585
    %636 = vst [vmem:[%s6] sm:$0x1] %v635
    // Predicated region
    $region34: #{_forward_both.1} parent=1 // pred_check
      _
    $region35: #{_forward_both.1} parent=1 // pred_check_branch
      %638 = sbr.rel (0) target = $region37
    $region36: #{_forward_both.1} parent=1 // pred_region
      _
    $region37: #{_forward_both.1} parent=1 // pred_fallthru
      _
    // Predicated region
    $region38: #{_forward_both.1} parent=1 // pred_check
      _
    $region39: #{_forward_both.1} parent=1 // pred_check_branch
      %640 = sbr.rel (0) target = $region41
    $region40: #{_forward_both.1} parent=1 // pred_region
      _
    $region41: #{_forward_both.1} parent=1 // pred_fallthru
      _
    // Predicated region
    $region42: #{_forward_both.1} parent=1 // pred_check
      _
    $region43: #{_forward_both.1} parent=1 // pred_check_branch
      %642 = sbr.rel (0) target = $region45
    $region44: #{_forward_both.1} parent=1 // pred_region
      _
    $region45: #{_forward_both.1} parent=1 // pred_fallthru
      _
    // Predicated region
    $region46: #{_forward_both.1} parent=1 // pred_check
      _
    $region47: #{_forward_both.1} parent=1 // pred_check_branch
      %644 = sbr.rel (0) target = $region49
    $region48: #{_forward_both.1} parent=1 // pred_region
      _
    $region49: #{_forward_both.1} parent=1 // pred_fallthru
      _
    %645 = vsyncpa [#allocation4], 1
    %646 = vsyncpa [#allocation6], 1

</llo_original>
